<compile_context>
chip_gen: v5e
topology: v5e:2x2
jax: 0.10.0
libtpu: 0.0.40
codegen_flags: <defaults>
</compile_context>

<pallas_src>
import functools

import jax
import jax.numpy as jnp
from jax.experimental import pallas as pl
from jax.experimental.pallas import tpu as pltpu


def _lstm_fc_kernel(x_ref, h0_ref, c0_ref, w_ih_ref, w_hh_ref, b_ref,
                    w_fc_ref, b_fc_ref,
                    out_ref, hn_ref, cn_ref,
                    *, seq_len, hidden_size, batch):
    """Whole-sequence LSTM + deferred dense, single kernel invocation.

    x_ref    : (B*T, I)   rows in (b, t) order (batch_first flatten)
    h0/c0    : (B, H)
    w_ih     : (I, 4H), w_hh : (H, 4H), b : (1, 4H)  (PyTorch gate order [i, f, g, o])
    w_fc     : (H, O_pad), b_fc : (1, O_pad)         (O padded to 128 lanes)
    out      : (B*T, O_pad), hn/cn : (B, H)
    """
    T, H, B = seq_len, hidden_size, batch

    # ---- Off-the-recurrent-chain work, hoisted ------------------------------------
    w_hh = w_hh_ref[...]                                          # (H, 4H)
    # Input projection + combined bias for ALL timesteps in one MXU matmul.
    gates_x = (jnp.dot(x_ref[...], w_ih_ref[...],
                       preferred_element_type=jnp.float32)
               + b_ref[...])                                      # (B*T, 4H)
    gates_x = gates_x.reshape(B, T, 4 * H)                        # leading-dim split only

    # ---- Serial recurrence: only h @ W_hh + elementwise on the critical path -------
    h = h0_ref[...]                                               # (B, H)
    c = c0_ref[...]                                               # (B, H)
    hs = []
    # T is small & static -> full unroll (trace-level lax.fori_loop(..., unroll=True)).
    for t in range(T):
        gates = gates_x[:, t, :] + jnp.dot(h, w_hh,
                                           preferred_element_type=jnp.float32)
        # Full-width transcendentals: 1 sigmoid + 1 tanh over the (B, 4H) vreg.
        sig = jax.nn.sigmoid(gates)
        th = jnp.tanh(gates)
        i_g = sig[:, 0 * H:1 * H]
        f_g = sig[:, 1 * H:2 * H]
        g_g = th[:, 2 * H:3 * H]
        o_g = sig[:, 3 * H:4 * H]
        c = f_g * c + i_g * g_g
        h = o_g * jnp.tanh(c)
        hs.append(h)

    # ---- Epilogue: final states written exactly once --------------------------------
    hn_ref[...] = h.astype(hn_ref.dtype)
    cn_ref[...] = c.astype(cn_ref.dtype)

    # Deferred final dense: hidden history stays in vregs, one (B*T, H) @ (H, 128)
    # matmul, one unmasked lane-dense output store. Rows already in (b, t) order.
    h_all = jnp.stack(hs, axis=1).reshape(B * T, H)               # (B*T, H)
    y = (jnp.dot(h_all, w_fc_ref[...], preferred_element_type=jnp.float32)
         + b_fc_ref[...])
    out_ref[...] = y.astype(out_ref.dtype)


def load_forecaster_forward(x_btI, h0, c0, params):
    """Forward pass matching LoadForecaster.forward (use_finaldense=True).

    x_btI : (B, T, I) float32  (batch_first=True)
    h0,c0 : (1, B, H) float32  (num_layers == 1)
    returns (output (B, T, O), (h_n (1,B,H), c_n (1,B,H)))
    """
    w_ih, w_hh, b_ih, b_hh, w_fc, b_fc = (
        params["w_ih"], params["w_hh"], params["b_ih"], params["b_hh"],
        params["w_fc"], params["b_fc"])

    B, T, I = x_btI.shape
    H = w_hh.shape[1]                     # torch w_hh: (4H, H)
    O = w_fc.shape[0]                     # torch w_fc: (O, H)

    if T == 0:                            # empty-sequence guard
        return jnp.zeros((B, 0, O), jnp.float32), (h0, c0)

    O_pad = ((O + 127) // 128) * 128      # lane-dense output width (>= 128)

    # One-time parameter prep (constant-folded under jit / hoist outside the hot path).
    w_ih_t = jnp.transpose(w_ih, (1, 0))                            # (I, 4H)
    w_hh_t = jnp.transpose(w_hh, (1, 0))                            # (H, 4H)
    bias = (b_ih + b_hh).reshape(1, 4 * H)                          # (1, 4H)
    w_fc_p = jnp.zeros((H, O_pad), jnp.float32).at[:, :O].set(
        jnp.transpose(w_fc, (1, 0)))                                # (H, O_pad)
    b_fc_p = jnp.zeros((1, O_pad), jnp.float32).at[:, :O].set(
        b_fc.reshape(1, O))                                         # (1, O_pad)

    x_flat = x_btI.reshape(B * T, I)      # free metadata reshape, rows in (b, t) order
    h0_2d, c0_2d = h0[0], c0[0]

    kernel = functools.partial(_lstm_fc_kernel,
                               seq_len=T, hidden_size=H, batch=B)
    vmem = pl.BlockSpec(memory_space=pltpu.MemorySpace.VMEM)

    out_flat, h_n, c_n = pl.pallas_call(
        kernel,
        out_shape=(
            jax.ShapeDtypeStruct((B * T, O_pad), jnp.float32),      # lane-dense rows
            jax.ShapeDtypeStruct((B, H), jnp.float32),              # h_n
            jax.ShapeDtypeStruct((B, H), jnp.float32),              # c_n
        ),
        in_specs=[vmem] * 8,
        out_specs=(vmem, vmem, vmem),
    )(x_flat, h0_2d, c0_2d, w_ih_t, w_hh_t, bias, w_fc_p, b_fc_p)

    output = out_flat.reshape(B, T, O_pad)[:, :, :O]                # free reshape + slice
    return output, (h_n[None], c_n[None])


def _reference_forward(x_btI, h0, c0, params):
    """Pure-JAX reference implementing torch.nn.LSTM (1 layer) + Linear."""
    w_ih, w_hh, b_ih, b_hh, w_fc, b_fc = (
        params["w_ih"], params["w_hh"], params["b_ih"], params["b_hh"],
        params["w_fc"], params["b_fc"])
    H = w_hh.shape[1]

    def step(carry, x_t):
        h, c = carry
        gates = x_t @ w_ih.T + b_ih + h @ w_hh.T + b_hh
        i = jax.nn.sigmoid(gates[:, 0 * H:1 * H])
        f = jax.nn.sigmoid(gates[:, 1 * H:2 * H])
        g = jnp.tanh(gates[:, 2 * H:3 * H])
        o = jax.nn.sigmoid(gates[:, 3 * H:4 * H])
        c_new = f * c + i * g
        h_new = o * jnp.tanh(c_new)
        return (h_new, c_new), h_new

    x_tbI = jnp.transpose(x_btI, (1, 0, 2))
    (h_n, c_n), hs = jax.lax.scan(step, (h0[0], c0[0]), x_tbI)
    out = hs @ w_fc.T + b_fc                                        # (T, B, O)
    return jnp.transpose(out, (1, 0, 2)), (h_n[None], c_n[None])


if __name__ == "__main__":
    # Shapes consistent with LoadForecaster(input_size=4, hidden_size=32,
    # output_size=4, num_layer=1), batch=2, seq=8.
    B, T, I, H, O = 2, 8, 4, 32, 4

    key = jax.random.PRNGKey(0)
    ks = jax.random.split(key, 9)
    scale = 1.0 / jnp.sqrt(H)
    params = {
        "w_ih": jax.random.uniform(ks[0], (4 * H, I), jnp.float32, -scale, scale),
        "w_hh": jax.random.uniform(ks[1], (4 * H, H), jnp.float32, -scale, scale),
        "b_ih": jax.random.uniform(ks[2], (4 * H,), jnp.float32, -scale, scale),
        "b_hh": jax.random.uniform(ks[3], (4 * H,), jnp.float32, -scale, scale),
        "w_fc": jax.random.uniform(ks[4], (O, H), jnp.float32, -scale, scale),
        "b_fc": jax.random.uniform(ks[5], (O,), jnp.float32, -scale, scale),
    }

    x = jax.random.normal(ks[6], (B, T, I), jnp.float32)
    # init_hidden: zeros for h0, randn for c0
    h0 = jnp.zeros((1, B, H), jnp.float32)
    c0 = jax.random.normal(ks[7], (1, B, H), jnp.float32)

    out, (h_n, c_n) = load_forecaster_forward(x, h0, c0, params)
    jax.block_until_ready((out, h_n, c_n))

    ref_out, (ref_hn, ref_cn) = _reference_forward(x, h0, c0, params)
    assert jnp.allclose(out, ref_out, atol=1e-4, rtol=1e-4)
    assert jnp.allclose(h_n, ref_hn, atol=1e-4, rtol=1e-4)
    assert jnp.allclose(c_n, ref_cn, atol=1e-4, rtol=1e-4)

    print("KERNEL_OK")
</pallas_src>

<mosaic_0001>
module attributes {stable_mosaic.version = 11 : i64} {
  func.func @_lstm_fc_kernel(%arg0: memref<16x4xf32, #tpu.memory_space<vmem>>, %arg1: memref<2x32xf32, #tpu.memory_space<vmem>>, %arg2: memref<2x32xf32, #tpu.memory_space<vmem>>, %arg3: memref<4x128xf32, #tpu.memory_space<vmem>>, %arg4: memref<32x128xf32, #tpu.memory_space<vmem>>, %arg5: memref<1x128xf32, #tpu.memory_space<vmem>>, %arg6: memref<32x128xf32, #tpu.memory_space<vmem>>, %arg7: memref<1x128xf32, #tpu.memory_space<vmem>>, %arg8: memref<16x128xf32, #tpu.memory_space<vmem>>, %arg9: memref<2x32xf32, #tpu.memory_space<vmem>>, %arg10: memref<2x32xf32, #tpu.memory_space<vmem>>) attributes {dimension_semantics = [], scalar_prefetch = 0 : i64, scratch_operands = 0 : i64, tpu.core_type = #tpu.core_type<tc>} {
    %c0 = arith.constant 0 : index
    %c0_0 = arith.constant 0 : index
    %0 = vector.load %arg4[%c0, %c0_0] : memref<32x128xf32, #tpu.memory_space<vmem>>, vector<32x128xf32>
    %c0_1 = arith.constant 0 : index
    %c0_2 = arith.constant 0 : index
    %1 = vector.load %arg0[%c0_1, %c0_2] : memref<16x4xf32, #tpu.memory_space<vmem>>, vector<16x4xf32>
    %c0_3 = arith.constant 0 : index
    %c0_4 = arith.constant 0 : index
    %2 = vector.load %arg3[%c0_3, %c0_4] : memref<4x128xf32, #tpu.memory_space<vmem>>, vector<4x128xf32>
    %cst = arith.constant dense<0.000000e+00> : vector<16x128xf32>
    %3 = tpu.matmul %1, %2, %cst {dimension_numbers = #tpu.dot_dimension_numbers<[1], [0], [0], [1], [0, 0, 1, 1], [], []>} : vector<16x4xf32>, vector<4x128xf32>, vector<16x128xf32> -> vector<16x128xf32>
    %c0_5 = arith.constant 0 : index
    %c0_6 = arith.constant 0 : index
    %4 = vector.load %arg5[%c0_5, %c0_6] : memref<1x128xf32, #tpu.memory_space<vmem>>, vector<1x128xf32>
    %5 = vector.broadcast %4 : vector<1x128xf32> to vector<16x128xf32>
    %6 = arith.addf %3, %5 : vector<16x128xf32>
    %7 = vector.shape_cast %6 : vector<16x128xf32> to vector<2x8x128xf32>
    %c0_7 = arith.constant 0 : index
    %c0_8 = arith.constant 0 : index
    %8 = vector.load %arg1[%c0_7, %c0_8] : memref<2x32xf32, #tpu.memory_space<vmem>>, vector<2x32xf32>
    %c0_9 = arith.constant 0 : index
    %c0_10 = arith.constant 0 : index
    %9 = vector.load %arg2[%c0_9, %c0_10] : memref<2x32xf32, #tpu.memory_space<vmem>>, vector<2x32xf32>
    %10 = vector.extract_strided_slice %7 {offsets = [0, 0, 0], sizes = [2, 1, 128], strides = [1, 1, 1]} : vector<2x8x128xf32> to vector<2x1x128xf32>
    %11 = vector.shape_cast %10 : vector<2x1x128xf32> to vector<2x128xf32>
    %cst_11 = arith.constant dense<0.000000e+00> : vector<2x128xf32>
    %12 = tpu.matmul %8, %0, %cst_11 {dimension_numbers = #tpu.dot_dimension_numbers<[1], [0], [0], [1], [0, 0, 1, 1], [], []>} : vector<2x32xf32>, vector<32x128xf32>, vector<2x128xf32> -> vector<2x128xf32>
    %13 = arith.addf %11, %12 : vector<2x128xf32>
    %14 = arith.negf %13 : vector<2x128xf32>
    %15 = math.exp %14 : vector<2x128xf32>
    %cst_12 = arith.constant 1.000000e+00 : f32
    %16 = vector.broadcast %cst_12 : f32 to vector<2x128xf32>
    %17 = arith.addf %16, %15 : vector<2x128xf32>
    %18 = arith.divf %16, %17 : vector<2x128xf32>
    %19 = math.tanh %13 : vector<2x128xf32>
    %20 = vector.extract_strided_slice %18 {offsets = [0, 0], sizes = [2, 32], strides = [1, 1]} : vector<2x128xf32> to vector<2x32xf32>
    %21 = vector.extract_strided_slice %18 {offsets = [0, 32], sizes = [2, 32], strides = [1, 1]} : vector<2x128xf32> to vector<2x32xf32>
    %22 = vector.extract_strided_slice %19 {offsets = [0, 64], sizes = [2, 32], strides = [1, 1]} : vector<2x128xf32> to vector<2x32xf32>
    %23 = vector.extract_strided_slice %18 {offsets = [0, 96], sizes = [2, 32], strides = [1, 1]} : vector<2x128xf32> to vector<2x32xf32>
    %24 = arith.mulf %21, %9 : vector<2x32xf32>
    %25 = arith.mulf %20, %22 : vector<2x32xf32>
    %26 = arith.addf %24, %25 : vector<2x32xf32>
    %27 = math.tanh %26 : vector<2x32xf32>
    %28 = arith.mulf %23, %27 : vector<2x32xf32>
    %29 = vector.extract_strided_slice %7 {offsets = [0, 1, 0], sizes = [2, 1, 128], strides = [1, 1, 1]} : vector<2x8x128xf32> to vector<2x1x128xf32>
    %30 = vector.shape_cast %29 : vector<2x1x128xf32> to vector<2x128xf32>
    %cst_13 = arith.constant dense<0.000000e+00> : vector<2x128xf32>
    %31 = tpu.matmul %28, %0, %cst_13 {dimension_numbers = #tpu.dot_dimension_numbers<[1], [0], [0], [1], [0, 0, 1, 1], [], []>} : vector<2x32xf32>, vector<32x128xf32>, vector<2x128xf32> -> vector<2x128xf32>
    %32 = arith.addf %30, %31 : vector<2x128xf32>
    %33 = arith.negf %32 : vector<2x128xf32>
    %34 = math.exp %33 : vector<2x128xf32>
    %cst_14 = arith.constant 1.000000e+00 : f32
    %35 = vector.broadcast %cst_14 : f32 to vector<2x128xf32>
    %36 = arith.addf %35, %34 : vector<2x128xf32>
    %37 = arith.divf %35, %36 : vector<2x128xf32>
    %38 = math.tanh %32 : vector<2x128xf32>
    %39 = vector.extract_strided_slice %37 {offsets = [0, 0], sizes = [2, 32], strides = [1, 1]} : vector<2x128xf32> to vector<2x32xf32>
    %40 = vector.extract_strided_slice %37 {offsets = [0, 32], sizes = [2, 32], strides = [1, 1]} : vector<2x128xf32> to vector<2x32xf32>
    %41 = vector.extract_strided_slice %38 {offsets = [0, 64], sizes = [2, 32], strides = [1, 1]} : vector<2x128xf32> to vector<2x32xf32>
    %42 = vector.extract_strided_slice %37 {offsets = [0, 96], sizes = [2, 32], strides = [1, 1]} : vector<2x128xf32> to vector<2x32xf32>
    %43 = arith.mulf %40, %26 : vector<2x32xf32>
    %44 = arith.mulf %39, %41 : vector<2x32xf32>
    %45 = arith.addf %43, %44 : vector<2x32xf32>
    %46 = math.tanh %45 : vector<2x32xf32>
    %47 = arith.mulf %42, %46 : vector<2x32xf32>
    %48 = vector.extract_strided_slice %7 {offsets = [0, 2, 0], sizes = [2, 1, 128], strides = [1, 1, 1]} : vector<2x8x128xf32> to vector<2x1x128xf32>
    %49 = vector.shape_cast %48 : vector<2x1x128xf32> to vector<2x128xf32>
    %cst_15 = arith.constant dense<0.000000e+00> : vector<2x128xf32>
    %50 = tpu.matmul %47, %0, %cst_15 {dimension_numbers = #tpu.dot_dimension_numbers<[1], [0], [0], [1], [0, 0, 1, 1], [], []>} : vector<2x32xf32>, vector<32x128xf32>, vector<2x128xf32> -> vector<2x128xf32>
    %51 = arith.addf %49, %50 : vector<2x128xf32>
    %52 = arith.negf %51 : vector<2x128xf32>
    %53 = math.exp %52 : vector<2x128xf32>
    %cst_16 = arith.constant 1.000000e+00 : f32
    %54 = vector.broadcast %cst_16 : f32 to vector<2x128xf32>
    %55 = arith.addf %54, %53 : vector<2x128xf32>
    %56 = arith.divf %54, %55 : vector<2x128xf32>
    %57 = math.tanh %51 : vector<2x128xf32>
    %58 = vector.extract_strided_slice %56 {offsets = [0, 0], sizes = [2, 32], strides = [1, 1]} : vector<2x128xf32> to vector<2x32xf32>
    %59 = vector.extract_strided_slice %56 {offsets = [0, 32], sizes = [2, 32], strides = [1, 1]} : vector<2x128xf32> to vector<2x32xf32>
    %60 = vector.extract_strided_slice %57 {offsets = [0, 64], sizes = [2, 32], strides = [1, 1]} : vector<2x128xf32> to vector<2x32xf32>
    %61 = vector.extract_strided_slice %56 {offsets = [0, 96], sizes = [2, 32], strides = [1, 1]} : vector<2x128xf32> to vector<2x32xf32>
    %62 = arith.mulf %59, %45 : vector<2x32xf32>
    %63 = arith.mulf %58, %60 : vector<2x32xf32>
    %64 = arith.addf %62, %63 : vector<2x32xf32>
    %65 = math.tanh %64 : vector<2x32xf32>
    %66 = arith.mulf %61, %65 : vector<2x32xf32>
    %67 = vector.extract_strided_slice %7 {offsets = [0, 3, 0], sizes = [2, 1, 128], strides = [1, 1, 1]} : vector<2x8x128xf32> to vector<2x1x128xf32>
    %68 = vector.shape_cast %67 : vector<2x1x128xf32> to vector<2x128xf32>
    %cst_17 = arith.constant dense<0.000000e+00> : vector<2x128xf32>
    %69 = tpu.matmul %66, %0, %cst_17 {dimension_numbers = #tpu.dot_dimension_numbers<[1], [0], [0], [1], [0, 0, 1, 1], [], []>} : vector<2x32xf32>, vector<32x128xf32>, vector<2x128xf32> -> vector<2x128xf32>
    %70 = arith.addf %68, %69 : vector<2x128xf32>
    %71 = arith.negf %70 : vector<2x128xf32>
    %72 = math.exp %71 : vector<2x128xf32>
    %cst_18 = arith.constant 1.000000e+00 : f32
    %73 = vector.broadcast %cst_18 : f32 to vector<2x128xf32>
    %74 = arith.addf %73, %72 : vector<2x128xf32>
    %75 = arith.divf %73, %74 : vector<2x128xf32>
    %76 = math.tanh %70 : vector<2x128xf32>
    %77 = vector.extract_strided_slice %75 {offsets = [0, 0], sizes = [2, 32], strides = [1, 1]} : vector<2x128xf32> to vector<2x32xf32>
    %78 = vector.extract_strided_slice %75 {offsets = [0, 32], sizes = [2, 32], strides = [1, 1]} : vector<2x128xf32> to vector<2x32xf32>
    %79 = vector.extract_strided_slice %76 {offsets = [0, 64], sizes = [2, 32], strides = [1, 1]} : vector<2x128xf32> to vector<2x32xf32>
    %80 = vector.extract_strided_slice %75 {offsets = [0, 96], sizes = [2, 32], strides = [1, 1]} : vector<2x128xf32> to vector<2x32xf32>
    %81 = arith.mulf %78, %64 : vector<2x32xf32>
    %82 = arith.mulf %77, %79 : vector<2x32xf32>
    %83 = arith.addf %81, %82 : vector<2x32xf32>
    %84 = math.tanh %83 : vector<2x32xf32>
    %85 = arith.mulf %80, %84 : vector<2x32xf32>
    %86 = vector.extract_strided_slice %7 {offsets = [0, 4, 0], sizes = [2, 1, 128], strides = [1, 1, 1]} : vector<2x8x128xf32> to vector<2x1x128xf32>
    %87 = vector.shape_cast %86 : vector<2x1x128xf32> to vector<2x128xf32>
    %cst_19 = arith.constant dense<0.000000e+00> : vector<2x128xf32>
    %88 = tpu.matmul %85, %0, %cst_19 {dimension_numbers = #tpu.dot_dimension_numbers<[1], [0], [0], [1], [0, 0, 1, 1], [], []>} : vector<2x32xf32>, vector<32x128xf32>, vector<2x128xf32> -> vector<2x128xf32>
    %89 = arith.addf %87, %88 : vector<2x128xf32>
    %90 = arith.negf %89 : vector<2x128xf32>
    %91 = math.exp %90 : vector<2x128xf32>
    %cst_20 = arith.constant 1.000000e+00 : f32
    %92 = vector.broadcast %cst_20 : f32 to vector<2x128xf32>
    %93 = arith.addf %92, %91 : vector<2x128xf32>
    %94 = arith.divf %92, %93 : vector<2x128xf32>
    %95 = math.tanh %89 : vector<2x128xf32>
    %96 = vector.extract_strided_slice %94 {offsets = [0, 0], sizes = [2, 32], strides = [1, 1]} : vector<2x128xf32> to vector<2x32xf32>
    %97 = vector.extract_strided_slice %94 {offsets = [0, 32], sizes = [2, 32], strides = [1, 1]} : vector<2x128xf32> to vector<2x32xf32>
    %98 = vector.extract_strided_slice %95 {offsets = [0, 64], sizes = [2, 32], strides = [1, 1]} : vector<2x128xf32> to vector<2x32xf32>
    %99 = vector.extract_strided_slice %94 {offsets = [0, 96], sizes = [2, 32], strides = [1, 1]} : vector<2x128xf32> to vector<2x32xf32>
    %100 = arith.mulf %97, %83 : vector<2x32xf32>
    %101 = arith.mulf %96, %98 : vector<2x32xf32>
    %102 = arith.addf %100, %101 : vector<2x32xf32>
    %103 = math.tanh %102 : vector<2x32xf32>
    %104 = arith.mulf %99, %103 : vector<2x32xf32>
    %105 = vector.extract_strided_slice %7 {offsets = [0, 5, 0], sizes = [2, 1, 128], strides = [1, 1, 1]} : vector<2x8x128xf32> to vector<2x1x128xf32>
    %106 = vector.shape_cast %105 : vector<2x1x128xf32> to vector<2x128xf32>
    %cst_21 = arith.constant dense<0.000000e+00> : vector<2x128xf32>
    %107 = tpu.matmul %104, %0, %cst_21 {dimension_numbers = #tpu.dot_dimension_numbers<[1], [0], [0], [1], [0, 0, 1, 1], [], []>} : vector<2x32xf32>, vector<32x128xf32>, vector<2x128xf32> -> vector<2x128xf32>
    %108 = arith.addf %106, %107 : vector<2x128xf32>
    %109 = arith.negf %108 : vector<2x128xf32>
    %110 = math.exp %109 : vector<2x128xf32>
    %cst_22 = arith.constant 1.000000e+00 : f32
    %111 = vector.broadcast %cst_22 : f32 to vector<2x128xf32>
    %112 = arith.addf %111, %110 : vector<2x128xf32>
    %113 = arith.divf %111, %112 : vector<2x128xf32>
    %114 = math.tanh %108 : vector<2x128xf32>
    %115 = vector.extract_strided_slice %113 {offsets = [0, 0], sizes = [2, 32], strides = [1, 1]} : vector<2x128xf32> to vector<2x32xf32>
    %116 = vector.extract_strided_slice %113 {offsets = [0, 32], sizes = [2, 32], strides = [1, 1]} : vector<2x128xf32> to vector<2x32xf32>
    %117 = vector.extract_strided_slice %114 {offsets = [0, 64], sizes = [2, 32], strides = [1, 1]} : vector<2x128xf32> to vector<2x32xf32>
    %118 = vector.extract_strided_slice %113 {offsets = [0, 96], sizes = [2, 32], strides = [1, 1]} : vector<2x128xf32> to vector<2x32xf32>
    %119 = arith.mulf %116, %102 : vector<2x32xf32>
    %120 = arith.mulf %115, %117 : vector<2x32xf32>
    %121 = arith.addf %119, %120 : vector<2x32xf32>
    %122 = math.tanh %121 : vector<2x32xf32>
    %123 = arith.mulf %118, %122 : vector<2x32xf32>
    %124 = vector.extract_strided_slice %7 {offsets = [0, 6, 0], sizes = [2, 1, 128], strides = [1, 1, 1]} : vector<2x8x128xf32> to vector<2x1x128xf32>
    %125 = vector.shape_cast %124 : vector<2x1x128xf32> to vector<2x128xf32>
    %cst_23 = arith.constant dense<0.000000e+00> : vector<2x128xf32>
    %126 = tpu.matmul %123, %0, %cst_23 {dimension_numbers = #tpu.dot_dimension_numbers<[1], [0], [0], [1], [0, 0, 1, 1], [], []>} : vector<2x32xf32>, vector<32x128xf32>, vector<2x128xf32> -> vector<2x128xf32>
    %127 = arith.addf %125, %126 : vector<2x128xf32>
    %128 = arith.negf %127 : vector<2x128xf32>
    %129 = math.exp %128 : vector<2x128xf32>
    %cst_24 = arith.constant 1.000000e+00 : f32
    %130 = vector.broadcast %cst_24 : f32 to vector<2x128xf32>
    %131 = arith.addf %130, %129 : vector<2x128xf32>
    %132 = arith.divf %130, %131 : vector<2x128xf32>
    %133 = math.tanh %127 : vector<2x128xf32>
    %134 = vector.extract_strided_slice %132 {offsets = [0, 0], sizes = [2, 32], strides = [1, 1]} : vector<2x128xf32> to vector<2x32xf32>
    %135 = vector.extract_strided_slice %132 {offsets = [0, 32], sizes = [2, 32], strides = [1, 1]} : vector<2x128xf32> to vector<2x32xf32>
    %136 = vector.extract_strided_slice %133 {offsets = [0, 64], sizes = [2, 32], strides = [1, 1]} : vector<2x128xf32> to vector<2x32xf32>
    %137 = vector.extract_strided_slice %132 {offsets = [0, 96], sizes = [2, 32], strides = [1, 1]} : vector<2x128xf32> to vector<2x32xf32>
    %138 = arith.mulf %135, %121 : vector<2x32xf32>
    %139 = arith.mulf %134, %136 : vector<2x32xf32>
    %140 = arith.addf %138, %139 : vector<2x32xf32>
    %141 = math.tanh %140 : vector<2x32xf32>
    %142 = arith.mulf %137, %141 : vector<2x32xf32>
    %143 = vector.extract_strided_slice %7 {offsets = [0, 7, 0], sizes = [2, 1, 128], strides = [1, 1, 1]} : vector<2x8x128xf32> to vector<2x1x128xf32>
    %144 = vector.shape_cast %143 : vector<2x1x128xf32> to vector<2x128xf32>
    %cst_25 = arith.constant dense<0.000000e+00> : vector<2x128xf32>
    %145 = tpu.matmul %142, %0, %cst_25 {dimension_numbers = #tpu.dot_dimension_numbers<[1], [0], [0], [1], [0, 0, 1, 1], [], []>} : vector<2x32xf32>, vector<32x128xf32>, vector<2x128xf32> -> vector<2x128xf32>
    %146 = arith.addf %144, %145 : vector<2x128xf32>
    %147 = arith.negf %146 : vector<2x128xf32>
    %148 = math.exp %147 : vector<2x128xf32>
    %cst_26 = arith.constant 1.000000e+00 : f32
    %149 = vector.broadcast %cst_26 : f32 to vector<2x128xf32>
    %150 = arith.addf %149, %148 : vector<2x128xf32>
    %151 = arith.divf %149, %150 : vector<2x128xf32>
    %152 = math.tanh %146 : vector<2x128xf32>
    %153 = vector.extract_strided_slice %151 {offsets = [0, 0], sizes = [2, 32], strides = [1, 1]} : vector<2x128xf32> to vector<2x32xf32>
    %154 = vector.extract_strided_slice %151 {offsets = [0, 32], sizes = [2, 32], strides = [1, 1]} : vector<2x128xf32> to vector<2x32xf32>
    %155 = vector.extract_strided_slice %152 {offsets = [0, 64], sizes = [2, 32], strides = [1, 1]} : vector<2x128xf32> to vector<2x32xf32>
    %156 = vector.extract_strided_slice %151 {offsets = [0, 96], sizes = [2, 32], strides = [1, 1]} : vector<2x128xf32> to vector<2x32xf32>
    %157 = arith.mulf %154, %140 : vector<2x32xf32>
    %158 = arith.mulf %153, %155 : vector<2x32xf32>
    %159 = arith.addf %157, %158 : vector<2x32xf32>
    %160 = math.tanh %159 : vector<2x32xf32>
    %161 = arith.mulf %156, %160 : vector<2x32xf32>
    %c0_27 = arith.constant 0 : index
    %c0_28 = arith.constant 0 : index
    %162 = vector.load %arg9[%c0_27, %c0_28] : memref<2x32xf32, #tpu.memory_space<vmem>>, vector<2x32xf32>
    tpu.vector_store %arg9[%c0_27, %c0_28], %161 {strides = array<i32>} : memref<2x32xf32, #tpu.memory_space<vmem>>, vector<2x32xf32>,
    %c0_29 = arith.constant 0 : index
    %c0_30 = arith.constant 0 : index
    %163 = vector.load %arg10[%c0_29, %c0_30] : memref<2x32xf32, #tpu.memory_space<vmem>>, vector<2x32xf32>
    tpu.vector_store %arg10[%c0_29, %c0_30], %159 {strides = array<i32>} : memref<2x32xf32, #tpu.memory_space<vmem>>, vector<2x32xf32>,
    %164 = vector.shape_cast %28 : vector<2x32xf32> to vector<2x1x32xf32>
    %165 = vector.shape_cast %47 : vector<2x32xf32> to vector<2x1x32xf32>
    %166 = vector.shape_cast %66 : vector<2x32xf32> to vector<2x1x32xf32>
    %167 = vector.shape_cast %85 : vector<2x32xf32> to vector<2x1x32xf32>
    %168 = vector.shape_cast %104 : vector<2x32xf32> to vector<2x1x32xf32>
    %169 = vector.shape_cast %123 : vector<2x32xf32> to vector<2x1x32xf32>
    %170 = vector.shape_cast %142 : vector<2x32xf32> to vector<2x1x32xf32>
    %171 = vector.shape_cast %161 : vector<2x32xf32> to vector<2x1x32xf32>
    %172 = tpu.concatenate %164, %165, %166, %167, %168, %169, %170, %171 in 1 : vector<2x1x32xf32>, vector<2x1x32xf32>, vector<2x1x32xf32>, vector<2x1x32xf32>, vector<2x1x32xf32>, vector<2x1x32xf32>, vector<2x1x32xf32>, vector<2x1x32xf32> -> vector<2x8x32xf32>
    %173 = vector.shape_cast %172 : vector<2x8x32xf32> to vector<16x32xf32>
    %c0_31 = arith.constant 0 : index
    %c0_32 = arith.constant 0 : index
    %174 = vector.load %arg6[%c0_31, %c0_32] : memref<32x128xf32, #tpu.memory_space<vmem>>, vector<32x128xf32>
    %cst_33 = arith.constant dense<0.000000e+00> : vector<16x128xf32>
    %175 = tpu.matmul %173, %174, %cst_33 {dimension_numbers = #tpu.dot_dimension_numbers<[1], [0], [0], [1], [0, 0, 1, 1], [], []>} : vector<16x32xf32>, vector<32x128xf32>, vector<16x128xf32> -> vector<16x128xf32>
    %c0_34 = arith.constant 0 : index
    %c0_35 = arith.constant 0 : index
    %176 = vector.load %arg7[%c0_34, %c0_35] : memref<1x128xf32, #tpu.memory_space<vmem>>, vector<1x128xf32>
    %177 = vector.broadcast %176 : vector<1x128xf32> to vector<16x128xf32>
    %178 = arith.addf %175, %177 : vector<16x128xf32>
    %c0_36 = arith.constant 0 : index
    %c0_37 = arith.constant 0 : index
    %179 = vector.load %arg8[%c0_36, %c0_37] : memref<16x128xf32, #tpu.memory_space<vmem>>, vector<16x128xf32>
    tpu.vector_store %arg8[%c0_36, %c0_37], %178 {strides = array<i32>} : memref<16x128xf32, #tpu.memory_space<vmem>>, vector<16x128xf32>,
    return
  }
}

</mosaic_0001>

<llo_original>
// kernel: tpu_custom_call.1
$region0: #{tpu_custom_call.1}
  #allocation0 [shape = 'u32[]', space=smem, size = 0x4, offset = 0x4, fixed_abs, tag = 'smem constant byte address 0x4 - core index']
  #allocation1 [shape = 'u32[72,128]{1,0:T(1,128)}', space=vmem, size = 0x9000, scoped, tag = 'internal scratch']
  %s0 = inlined_call_operand.vmem [shape: f32[16,4], index: 0, kind: input, shape index: {}]
  %s1 = inlined_call_operand.vmem [shape: f32[2,32], index: 1, kind: input, shape index: {}]
  %s2 = inlined_call_operand.vmem [shape: f32[2,32], index: 2, kind: input, shape index: {}]
  %s3 = inlined_call_operand.vmem [shape: f32[4,128], index: 3, kind: input, shape index: {}]
  %s4 = inlined_call_operand.hbm [shape: f32[32,128], index: 4, kind: input, shape index: {}]
  %s5 = inlined_call_operand.vmem [shape: f32[1,128], index: 5, kind: input, shape index: {}]
  %s6 = inlined_call_operand.hbm [shape: f32[32,128], index: 6, kind: input, shape index: {}]
  %s7 = inlined_call_operand.vmem [shape: f32[1,128], index: 7, kind: input, shape index: {}]
  %s8 = inlined_call_operand.hbm [shape: f32[16,128], index: 8, kind: output, shape index: {0}]
  %s9 = inlined_call_operand.hbm [shape: f32[2,32], index: 9, kind: output, shape index: {1}]
  %s10 = inlined_call_operand.hbm [shape: f32[2,32], index: 10, kind: output, shape index: {2}]
  %11 = xla_tuple %s8, %s9, %s10
  %s12 = sld [smem:[#allocation0]]
  $region66: #{tpu_custom_call.1} parent=0
    _
  %s14 = ssub.s32 1, %s12
  %s15 = scalar_select 0, %s14, %s12
  $region1: #{tpu_custom_call.1} parent=0
    #allocation2 [shape = 'u8[16384]{0}', space=vmem, size = 0x4000, scoped, tag = 'input window, operand 4, single buffered']
    #allocation3 [shape = 's32[1]{0}', space=sflag, size = 0x4, scoped, tag = 'scoped memory for tpu_custom_call.1']
    #allocation4 [shape = 's32[1]{0}', space=sflag, size = 0x4, scoped, tag = 'scoped memory for tpu_custom_call.1']
    #allocation5 [shape = 'u8[16384]{0}', space=vmem, size = 0x4000, scoped, tag = 'input window, operand 6, single buffered']
    #allocation6 [shape = 's32[1]{0}', space=sflag, size = 0x4, scoped, tag = 'scoped memory for tpu_custom_call.1']
    #allocation7 [shape = 'u8[8192]{0}', space=vmem, size = 0x2000, scoped, tag = 'output window, operand 0, single buffered']
    #allocation8 [shape = 'u8[1024]{0}', space=vmem, size = 0x400, scoped, tag = 'output window, operand 1, single buffered']
    #allocation9 [shape = 's32[1]{0}', space=sflag, size = 0x4, scoped, tag = 'scoped memory for tpu_custom_call.1']
    #allocation10 [shape = 'u8[1024]{0}', space=vmem, size = 0x400, scoped, tag = 'output window, operand 2, single buffered']
    %16 = vsyncpa [#allocation3], 0
    %17 = vsyncpa [#allocation6], 0
    %18 = vsyncpa [#allocation4], 0
    %19 = vsyncpa [#allocation9], 0
    // Predicated region
    $region2: #{tpu_custom_call.1} parent=1 // pred_check
      _
    $region3: #{tpu_custom_call.1} parent=1 // pred_check_branch
      %21 = sbr.rel (0) target = $region5
    $region4: #{tpu_custom_call.1} parent=1 // pred_region
      _
    $region5: #{tpu_custom_call.1} parent=1 // pred_fallthru
      _
    // Predicated region
    $region6: #{tpu_custom_call.1} parent=1 // pred_check
      _
    $region7: #{tpu_custom_call.1} parent=1 // pred_check_branch
      %23 = sbr.rel (0) target = $region9
    $region8: #{tpu_custom_call.1} parent=1 // pred_region
      _
    $region9: #{tpu_custom_call.1} parent=1 // pred_fallthru
      _
    // Predicated region
    $region10: #{tpu_custom_call.1} parent=1 // pred_check
      _
    $region11: #{tpu_custom_call.1} parent=1 // pred_check_branch
      %25 = sbr.rel (0) target = $region13
    $region12: #{tpu_custom_call.1} parent=1 // pred_region
      _
    $region13: #{tpu_custom_call.1} parent=1 // pred_fallthru
      _
    // Predicated region
    $region14: #{tpu_custom_call.1} parent=1 // pred_check
      _
    $region15: #{tpu_custom_call.1} parent=1 // pred_check_branch
      %27 = sbr.rel (0) target = $region17
    $region16: #{tpu_custom_call.1} parent=1 // pred_region
      _
    $region17: #{tpu_custom_call.1} parent=1 // pred_fallthru
      _
    // Predicated region
    $region18: #{tpu_custom_call.1} parent=1 // pred_check
      _
    $region19: #{tpu_custom_call.1} parent=1 // pred_check_branch
      %29 = sbr.rel (0) target = $region21
    $region20: #{tpu_custom_call.1} parent=1 // pred_region
      %31 = vsyncadd [#allocation3], 0
      %s32 = sshll.u32 %s4, 4
      %s33 = int_to_ptr.hbm [resolvable:$true] %s32
      %s34 = sshll.u32 [#allocation2], 4
      %s35 = int_to_ptr.vmem [resolvable:$true] %s34
      %40 = dma.hbm_to_vmem [thread:$0]  %s33, 512, %s35, [#allocation3], 128, 128, 8
    $region21: #{tpu_custom_call.1} parent=1 // pred_fallthru
      _
    // Predicated region
    $region22: #{tpu_custom_call.1} parent=1 // pred_check
      _
    $region23: #{tpu_custom_call.1} parent=1 // pred_check_branch
      %42 = sbr.rel (0) target = $region25
    $region24: #{tpu_custom_call.1} parent=1 // pred_region
      _
    $region25: #{tpu_custom_call.1} parent=1 // pred_fallthru
      _
    // Predicated region
    $region26: #{tpu_custom_call.1} parent=1 // pred_check
      _
    $region27: #{tpu_custom_call.1} parent=1 // pred_check_branch
      %44 = sbr.rel (0) target = $region29
    $region28: #{tpu_custom_call.1} parent=1 // pred_region
      %46 = vsyncadd [#allocation6], 0
      %s47 = sshll.u32 %s6, 4
      %s48 = int_to_ptr.hbm [resolvable:$true] %s47
      %s49 = sshll.u32 [#allocation5], 4
      %s50 = int_to_ptr.vmem [resolvable:$true] %s49
      %55 = dma.hbm_to_vmem [thread:$0]  %s48, 512, %s50, [#allocation6], 128, 128, 8
    $region29: #{tpu_custom_call.1} parent=1 // pred_fallthru
      _
    // Predicated region
    $region30: #{tpu_custom_call.1} parent=1 // pred_check
      _
    $region31: #{tpu_custom_call.1} parent=1 // pred_check_branch
      %57 = sbr.rel (0) target = $region33
    $region32: #{tpu_custom_call.1} parent=1 // pred_region
      _
    $region33: #{tpu_custom_call.1} parent=1 // pred_fallthru
      _
    // Predicated region
    $region34: #{tpu_custom_call.1} parent=1 // pred_check
      _
    $region35: #{tpu_custom_call.1} parent=1 // pred_check_branch
      %59 = sbr.rel (0) target = $region37
    $region36: #{tpu_custom_call.1} parent=1 // pred_region
      %61 = dma.done [#allocation3], 512
    $region37: #{tpu_custom_call.1} parent=1 // pred_fallthru
      _
    // Predicated region
    $region38: #{tpu_custom_call.1} parent=1 // pred_check
      _
    $region39: #{tpu_custom_call.1} parent=1 // pred_check_branch
      %63 = sbr.rel (0) target = $region41
    $region40: #{tpu_custom_call.1} parent=1 // pred_region
      %65 = dma.done [#allocation6], 512
    $region41: #{tpu_custom_call.1} parent=1 // pred_fallthru
      _
    %v66 = vld [vmem:[#allocation2] sm:$0xff]
    %v67 = vld [vmem:[#allocation2 + $0x8] sm:$0xff]
    %v68 = vld [vmem:[#allocation2 + $0x10] sm:$0xff]
    %v69 = vld [vmem:[#allocation2 + $0x18] sm:$0xff]
    %v70 = vld [vmem:[%s0] sm:$0xff]
    %v71 = vld [vmem:[%s0 + $0x8] sm:$0xff]
    %v72 = vld [vmem:[%s3] sm:$0xf]
    %v73 = vld [vmem:[%s5] sm:$0x1]
    %v75 = vperm.slane %v73, 0
    %vm77 = vcmask 31744
    %v79 = vsel %vm77, %v70, 0
    %v82 = vsel %vm77, %v71, 0
    %vm84 = vcmask 1043456
    %v86 = vsel %vm84, %v72, 0
    %88 = vmatpush.msra.mxu0 0.0
    %89 = vmatpush.msra.mxu0 0.0
    %90 = vmatpush.msra.mxu0 0.0
    %91 = vmatpush.msra.mxu0 0.0
    %92 = vmatpush.msra.mxu0 0.0
    %93 = vmatpush.msra.mxu0 0.0
    %94 = vmatpush.msra.mxu0 0.0
    %95 = vmatpush.msra.mxu0 0.0
    %96 = vmatpush.msra.mxu0 0.0
    %97 = vmatpush.msra.mxu0 0.0
    %98 = vmatpush.msra.mxu0 0.0
    %99 = vmatpush.msra.mxu0 0.0
    %100 = vmatpush.msra.mxu0 0.0
    %101 = vmatpush.msra.mxu0 0.0
    %102 = vmatpush.msra.mxu0 0.0
    %103 = vmatpush.msra.mxu0 %v86
    %104 = vmatmul.f32.gmra.mxu0 %v79
    %v105 = vpop.f32.mrf.mxu0
    %v106 = vadd.f32 %v75, %v105
    %107 = vmatmul.f32.gmra.mxu0 %v82
    %v108 = vpop.f32.mrf.mxu0
    %v109 = vadd.f32 %v75, %v108
    %110 = vdwg.mxu0
    %v111 = vld [vmem:[%s1] sm:$0x3]
    %v112 = vld [vmem:[%s2] sm:$0x3]
    %vm113 = vcmask 261120
    %v115 = vsel %vm113, %v111, 0
    %117 = vmatpush.msra.mxu0 0.0
    %118 = vmatpush.msra.mxu0 0.0
    %119 = vmatpush.msra.mxu0 0.0
    %120 = vmatpush.msra.mxu0 0.0
    %121 = vmatpush.msra.mxu0 0.0
    %122 = vmatpush.msra.mxu0 0.0
    %123 = vmatpush.msra.mxu0 0.0
    %124 = vmatpush.msra.mxu0 0.0
    %125 = vmatpush.msra.mxu0 0.0
    %126 = vmatpush.msra.mxu0 0.0
    %127 = vmatpush.msra.mxu0 0.0
    %128 = vmatpush.msra.mxu0 0.0
    %129 = vmatpush.msra.mxu0 %v69
    %130 = vmatpush.msra.mxu0 %v68
    %131 = vmatpush.msra.mxu0 %v67
    %132 = vmatpush.msra.mxu0 %v66
    %133 = vmatmul.f32.gmra.mxu0 %v115
    %v134 = vpop.f32.mrf.mxu0
    %v135 = vadd.f32 0.0, %v134
    %136 = vdwg.mxu0
    %v138 = vrot.slane %v135, 1
    %v141 = vadd.f32 %v106, %v135
    %v142 = vadd.f32 %v109, %v138
    %v143 = vxor.u32 %v141, 2147483648
    %v144 = vxor.u32 %v142, 2147483648
    %v145 = vmul.f32 %v143, 1.442695
    %v146 = vpow.pop %v145
    %v147 = vmul.f32 %v144, 1.442695
    %v148 = vpow.pop %v147
    %v149 = vadd.f32 %v146, 1.0
    %v150 = vadd.f32 %v148, 1.0
    %v151 = vrcp.pop %v149
    %v152 = vmul.f32 %v149, %v151
    %v153 = vsub.f32 1.0, %v152
    %v154 = vmul.f32 %v151, %v153
    %v155 = vadd.f32 %v151, %v154
    %vm156 = vweird.f32 %v149
    %vm157 = vweird.f32 %v151
    %vm158 = vmor %vm156, %vm157
    %v159 = vsel %vm158, %v151, %v155
    %v160 = vand.u32 2147483647, %v149
    %vm161 = vcmp.eq.f32.partialorder %v160, 8.507059e+37
    %v162 = vand.u32 %v149, 2147483648
    %v163 = vor.u32 1.1754944e-38, %v162
    %v164 = vsel %vm161, %v163, %v159
    %v165 = vmul.f32 1.0, %v164
    %v166 = vrcp.pop %v150
    %v167 = vmul.f32 %v150, %v166
    %v168 = vsub.f32 1.0, %v167
    %v169 = vmul.f32 %v166, %v168
    %v170 = vadd.f32 %v166, %v169
    %vm171 = vweird.f32 %v150
    %vm172 = vweird.f32 %v166
    %vm173 = vmor %vm171, %vm172
    %v174 = vsel %vm173, %v166, %v170
    %v175 = vand.u32 2147483647, %v150
    %vm176 = vcmp.eq.f32.partialorder %v175, 8.507059e+37
    %v177 = vand.u32 %v150, 2147483648
    %v178 = vor.u32 1.1754944e-38, %v177
    %v179 = vsel %vm176, %v178, %v174
    %v180 = vmul.f32 1.0, %v179
    %v181 = vtanh.pop %v141
    %v182 = vtanh.pop %v142
    %v184 = vrot.slane %v112, 1
    %185 = vrot.lane.b32.xlu0 %v112, 32
    %v186 = vpop.permute.xlu0 %185
    %187 = vrot.lane.b32.xlu0 %v184, 32
    %v188 = vpop.permute.xlu0 %187
    %v191 = vmul.f32 %v165, %v186
    %v192 = vmul.f32 %v180, %v188
    %195 = vrot.lane.b32.xlu0 %v181, 64
    %v196 = vpop.permute.xlu0 %195
    %197 = vrot.lane.b32.xlu0 %v182, 64
    %v198 = vpop.permute.xlu0 %197
    %v201 = vmul.f32 %v165, %v196
    %v202 = vmul.f32 %v180, %v198
    %205 = vrot.lane.b32.xlu0 %v201, 32
    %v206 = vpop.permute.xlu0 %205
    %207 = vrot.lane.b32.xlu0 %v202, 32
    %v208 = vpop.permute.xlu0 %207
    %v211 = vadd.f32 %v191, %v206
    %v212 = vadd.f32 %v192, %v208
    %v213 = vtanh.pop %v211
    %v214 = vtanh.pop %v212
    %217 = vrot.lane.b32.xlu0 %v213, 64
    %v218 = vpop.permute.xlu0 %217
    %219 = vrot.lane.b32.xlu0 %v214, 64
    %v220 = vpop.permute.xlu0 %219
    %v223 = vmul.f32 %v165, %v218
    %v224 = vmul.f32 %v180, %v220
    %v227 = vrot.slane %v224, 7
    %vm228 = vcmask 1041409
    %v229 = vsel %vm228, %v227, %v223
    %230 = vrot.lane.b32.xlu0 %v229, 32
    %v231 = vpop.permute.xlu0 %230
    %v232 = vsel %vm113, %v231, 0
    %234 = vmatpush.msra.mxu0 0.0
    %235 = vmatpush.msra.mxu0 0.0
    %236 = vmatpush.msra.mxu0 0.0
    %237 = vmatpush.msra.mxu0 0.0
    %238 = vmatpush.msra.mxu0 0.0
    %239 = vmatpush.msra.mxu0 0.0
    %240 = vmatpush.msra.mxu0 0.0
    %241 = vmatpush.msra.mxu0 0.0
    %242 = vmatpush.msra.mxu0 0.0
    %243 = vmatpush.msra.mxu0 0.0
    %244 = vmatpush.msra.mxu0 0.0
    %245 = vmatpush.msra.mxu0 0.0
    %246 = vmatpush.msra.mxu0 %v69
    %247 = vmatpush.msra.mxu0 %v68
    %248 = vmatpush.msra.mxu0 %v67
    %249 = vmatpush.msra.mxu0 %v66
    %250 = vmatmul.f32.gmra.mxu0 %v232
    %v251 = vpop.f32.mrf.mxu0
    %v252 = vadd.f32 0.0, %v251
    %253 = vdwg.mxu0
    %v255 = vrot.slane %v252, 7
    %v258 = vadd.f32 %v106, %v255
    %v259 = vadd.f32 %v109, %v252
    %v260 = vxor.u32 %v258, 2147483648
    %v261 = vxor.u32 %v259, 2147483648
    %v262 = vmul.f32 %v260, 1.442695
    %v263 = vpow.pop %v262
    %v264 = vmul.f32 %v261, 1.442695
    %v265 = vpow.pop %v264
    %v266 = vadd.f32 %v263, 1.0
    %v267 = vadd.f32 %v265, 1.0
    %v268 = vrcp.pop %v266
    %v269 = vmul.f32 %v266, %v268
    %v270 = vsub.f32 1.0, %v269
    %v271 = vmul.f32 %v268, %v270
    %v272 = vadd.f32 %v268, %v271
    %vm273 = vweird.f32 %v266
    %vm274 = vweird.f32 %v268
    %vm275 = vmor %vm273, %vm274
    %v276 = vsel %vm275, %v268, %v272
    %v277 = vand.u32 2147483647, %v266
    %vm278 = vcmp.eq.f32.partialorder %v277, 8.507059e+37
    %v279 = vand.u32 %v266, 2147483648
    %v280 = vor.u32 1.1754944e-38, %v279
    %v281 = vsel %vm278, %v280, %v276
    %v282 = vmul.f32 1.0, %v281
    %v283 = vrcp.pop %v267
    %v284 = vmul.f32 %v267, %v283
    %v285 = vsub.f32 1.0, %v284
    %v286 = vmul.f32 %v283, %v285
    %v287 = vadd.f32 %v283, %v286
    %vm288 = vweird.f32 %v267
    %vm289 = vweird.f32 %v283
    %vm290 = vmor %vm288, %vm289
    %v291 = vsel %vm290, %v283, %v287
    %v292 = vand.u32 2147483647, %v267
    %vm293 = vcmp.eq.f32.partialorder %v292, 8.507059e+37
    %v294 = vand.u32 %v267, 2147483648
    %v295 = vor.u32 1.1754944e-38, %v294
    %v296 = vsel %vm293, %v295, %v291
    %v297 = vmul.f32 1.0, %v296
    %v298 = vtanh.pop %v258
    %v299 = vtanh.pop %v259
    %v302 = vrot.slane %v211, 7
    %v303 = vrot.slane %v212, 7
    %v306 = vmul.f32 %v282, %v302
    %v307 = vmul.f32 %v297, %v303
    %310 = vrot.lane.b32.xlu0 %v298, 64
    %v311 = vpop.permute.xlu0 %310
    %312 = vrot.lane.b32.xlu0 %v299, 64
    %v313 = vpop.permute.xlu0 %312
    %v316 = vmul.f32 %v282, %v311
    %v317 = vmul.f32 %v297, %v313
    %320 = vrot.lane.b32.xlu0 %v316, 32
    %v321 = vpop.permute.xlu0 %320
    %322 = vrot.lane.b32.xlu0 %v317, 32
    %v323 = vpop.permute.xlu0 %322
    %v326 = vadd.f32 %v306, %v321
    %v327 = vadd.f32 %v307, %v323
    %v328 = vtanh.pop %v326
    %v329 = vtanh.pop %v327
    %332 = vrot.lane.b32.xlu0 %v328, 64
    %v333 = vpop.permute.xlu0 %332
    %334 = vrot.lane.b32.xlu0 %v329, 64
    %v335 = vpop.permute.xlu0 %334
    %v338 = vmul.f32 %v282, %v333
    %v339 = vmul.f32 %v297, %v335
    %v342 = vrot.slane %v338, 1
    %v343 = vsel %vm228, %v339, %v342
    %344 = vrot.lane.b32.xlu0 %v343, 32
    %v345 = vpop.permute.xlu0 %344
    %v346 = vsel %vm113, %v345, 0
    %348 = vmatpush.msra.mxu0 0.0
    %349 = vmatpush.msra.mxu0 0.0
    %350 = vmatpush.msra.mxu0 0.0
    %351 = vmatpush.msra.mxu0 0.0
    %352 = vmatpush.msra.mxu0 0.0
    %353 = vmatpush.msra.mxu0 0.0
    %354 = vmatpush.msra.mxu0 0.0
    %355 = vmatpush.msra.mxu0 0.0
    %356 = vmatpush.msra.mxu0 0.0
    %357 = vmatpush.msra.mxu0 0.0
    %358 = vmatpush.msra.mxu0 0.0
    %359 = vmatpush.msra.mxu0 0.0
    %360 = vmatpush.msra.mxu0 %v69
    %361 = vmatpush.msra.mxu0 %v68
    %362 = vmatpush.msra.mxu0 %v67
    %363 = vmatpush.msra.mxu0 %v66
    %364 = vmatmul.f32.gmra.mxu0 %v346
    %v365 = vpop.f32.mrf.mxu0
    %v366 = vadd.f32 0.0, %v365
    %367 = vdwg.mxu0
    %v369 = vrot.slane %v366, 6
    %v370 = vrot.slane %v366, 7
    %v373 = vadd.f32 %v106, %v369
    %v374 = vadd.f32 %v109, %v370
    %v375 = vxor.u32 %v373, 2147483648
    %v376 = vxor.u32 %v374, 2147483648
    %v377 = vmul.f32 %v375, 1.442695
    %v378 = vpow.pop %v377
    %v379 = vmul.f32 %v376, 1.442695
    %v380 = vpow.pop %v379
    %v381 = vadd.f32 %v378, 1.0
    %v382 = vadd.f32 %v380, 1.0
    %v383 = vrcp.pop %v381
    %v384 = vmul.f32 %v381, %v383
    %v385 = vsub.f32 1.0, %v384
    %v386 = vmul.f32 %v383, %v385
    %v387 = vadd.f32 %v383, %v386
    %vm388 = vweird.f32 %v381
    %vm389 = vweird.f32 %v383
    %vm390 = vmor %vm388, %vm389
    %v391 = vsel %vm390, %v383, %v387
    %v392 = vand.u32 2147483647, %v381
    %vm393 = vcmp.eq.f32.partialorder %v392, 8.507059e+37
    %v394 = vand.u32 %v381, 2147483648
    %v395 = vor.u32 1.1754944e-38, %v394
    %v396 = vsel %vm393, %v395, %v391
    %v397 = vmul.f32 1.0, %v396
    %v398 = vrcp.pop %v382
    %v399 = vmul.f32 %v382, %v398
    %v400 = vsub.f32 1.0, %v399
    %v401 = vmul.f32 %v398, %v400
    %v402 = vadd.f32 %v398, %v401
    %vm403 = vweird.f32 %v382
    %vm404 = vweird.f32 %v398
    %vm405 = vmor %vm403, %vm404
    %v406 = vsel %vm405, %v398, %v402
    %v407 = vand.u32 2147483647, %v382
    %vm408 = vcmp.eq.f32.partialorder %v407, 8.507059e+37
    %v409 = vand.u32 %v382, 2147483648
    %v410 = vor.u32 1.1754944e-38, %v409
    %v411 = vsel %vm408, %v410, %v406
    %v412 = vmul.f32 1.0, %v411
    %v413 = vtanh.pop %v373
    %v414 = vtanh.pop %v374
    %v417 = vrot.slane %v326, 7
    %v418 = vrot.slane %v327, 7
    %v421 = vmul.f32 %v397, %v417
    %v422 = vmul.f32 %v412, %v418
    %425 = vrot.lane.b32.xlu0 %v413, 64
    %v426 = vpop.permute.xlu0 %425
    %427 = vrot.lane.b32.xlu0 %v414, 64
    %v428 = vpop.permute.xlu0 %427
    %v431 = vmul.f32 %v397, %v426
    %v432 = vmul.f32 %v412, %v428
    %435 = vrot.lane.b32.xlu0 %v431, 32
    %v436 = vpop.permute.xlu0 %435
    %437 = vrot.lane.b32.xlu0 %v432, 32
    %v438 = vpop.permute.xlu0 %437
    %v441 = vadd.f32 %v421, %v436
    %v442 = vadd.f32 %v422, %v438
    %v443 = vtanh.pop %v441
    %v444 = vtanh.pop %v442
    %447 = vrot.lane.b32.xlu0 %v443, 64
    %v448 = vpop.permute.xlu0 %447
    %449 = vrot.lane.b32.xlu0 %v444, 64
    %v450 = vpop.permute.xlu0 %449
    %v453 = vmul.f32 %v397, %v448
    %v454 = vmul.f32 %v412, %v450
    %v457 = vrot.slane %v453, 2
    %v458 = vrot.slane %v454, 1
    %v459 = vsel %vm228, %v458, %v457
    %460 = vrot.lane.b32.xlu0 %v459, 32
    %v461 = vpop.permute.xlu0 %460
    %v462 = vsel %vm113, %v461, 0
    %464 = vmatpush.msra.mxu0 0.0
    %465 = vmatpush.msra.mxu0 0.0
    %466 = vmatpush.msra.mxu0 0.0
    %467 = vmatpush.msra.mxu0 0.0
    %468 = vmatpush.msra.mxu0 0.0
    %469 = vmatpush.msra.mxu0 0.0
    %470 = vmatpush.msra.mxu0 0.0
    %471 = vmatpush.msra.mxu0 0.0
    %472 = vmatpush.msra.mxu0 0.0
    %473 = vmatpush.msra.mxu0 0.0
    %474 = vmatpush.msra.mxu0 0.0
    %475 = vmatpush.msra.mxu0 0.0
    %476 = vmatpush.msra.mxu0 %v69
    %477 = vmatpush.msra.mxu0 %v68
    %478 = vmatpush.msra.mxu0 %v67
    %479 = vmatpush.msra.mxu0 %v66
    %480 = vmatmul.f32.gmra.mxu0 %v462
    %v481 = vpop.f32.mrf.mxu0
    %v482 = vadd.f32 0.0, %v481
    %483 = vdwg.mxu0
    %v485 = vrot.slane %v482, 5
    %v486 = vrot.slane %v482, 6
    %v489 = vadd.f32 %v106, %v485
    %v490 = vadd.f32 %v109, %v486
    %v491 = vxor.u32 %v489, 2147483648
    %v492 = vxor.u32 %v490, 2147483648
    %v493 = vmul.f32 %v491, 1.442695
    %v494 = vpow.pop %v493
    %v495 = vmul.f32 %v492, 1.442695
    %v496 = vpow.pop %v495
    %v497 = vadd.f32 %v494, 1.0
    %v498 = vadd.f32 %v496, 1.0
    %v499 = vrcp.pop %v497
    %v500 = vmul.f32 %v497, %v499
    %v501 = vsub.f32 1.0, %v500
    %v502 = vmul.f32 %v499, %v501
    %v503 = vadd.f32 %v499, %v502
    %vm504 = vweird.f32 %v497
    %vm505 = vweird.f32 %v499
    %vm506 = vmor %vm504, %vm505
    %v507 = vsel %vm506, %v499, %v503
    %v508 = vand.u32 2147483647, %v497
    %vm509 = vcmp.eq.f32.partialorder %v508, 8.507059e+37
    %v510 = vand.u32 %v497, 2147483648
    %v511 = vor.u32 1.1754944e-38, %v510
    %v512 = vsel %vm509, %v511, %v507
    %v513 = vmul.f32 1.0, %v512
    %v514 = vrcp.pop %v498
    %v515 = vmul.f32 %v498, %v514
    %v516 = vsub.f32 1.0, %v515
    %v517 = vmul.f32 %v514, %v516
    %v518 = vadd.f32 %v514, %v517
    %vm519 = vweird.f32 %v498
    %vm520 = vweird.f32 %v514
    %vm521 = vmor %vm519, %vm520
    %v522 = vsel %vm521, %v514, %v518
    %v523 = vand.u32 2147483647, %v498
    %vm524 = vcmp.eq.f32.partialorder %v523, 8.507059e+37
    %v525 = vand.u32 %v498, 2147483648
    %v526 = vor.u32 1.1754944e-38, %v525
    %v527 = vsel %vm524, %v526, %v522
    %v528 = vmul.f32 1.0, %v527
    %v529 = vtanh.pop %v489
    %v530 = vtanh.pop %v490
    %v533 = vrot.slane %v441, 7
    %v534 = vrot.slane %v442, 7
    %v537 = vmul.f32 %v513, %v533
    %v538 = vmul.f32 %v528, %v534
    %541 = vrot.lane.b32.xlu0 %v529, 64
    %v542 = vpop.permute.xlu0 %541
    %543 = vrot.lane.b32.xlu0 %v530, 64
    %v544 = vpop.permute.xlu0 %543
    %v547 = vmul.f32 %v513, %v542
    %v548 = vmul.f32 %v528, %v544
    %551 = vrot.lane.b32.xlu0 %v547, 32
    %v552 = vpop.permute.xlu0 %551
    %553 = vrot.lane.b32.xlu0 %v548, 32
    %v554 = vpop.permute.xlu0 %553
    %v557 = vadd.f32 %v537, %v552
    %v558 = vadd.f32 %v538, %v554
    %v559 = vtanh.pop %v557
    %v560 = vtanh.pop %v558
    %563 = vrot.lane.b32.xlu0 %v559, 64
    %v564 = vpop.permute.xlu0 %563
    %565 = vrot.lane.b32.xlu0 %v560, 64
    %v566 = vpop.permute.xlu0 %565
    %v569 = vmul.f32 %v513, %v564
    %v570 = vmul.f32 %v528, %v566
    %v573 = vrot.slane %v569, 3
    %v574 = vrot.slane %v570, 2
    %v575 = vsel %vm228, %v574, %v573
    %576 = vrot.lane.b32.xlu0 %v575, 32
    %v577 = vpop.permute.xlu0 %576
    %v578 = vsel %vm113, %v577, 0
    %580 = vmatpush.msra.mxu0 0.0
    %581 = vmatpush.msra.mxu0 0.0
    %582 = vmatpush.msra.mxu0 0.0
    %583 = vmatpush.msra.mxu0 0.0
    %584 = vmatpush.msra.mxu0 0.0
    %585 = vmatpush.msra.mxu0 0.0
    %586 = vmatpush.msra.mxu0 0.0
    %587 = vmatpush.msra.mxu0 0.0
    %588 = vmatpush.msra.mxu0 0.0
    %589 = vmatpush.msra.mxu0 0.0
    %590 = vmatpush.msra.mxu0 0.0
    %591 = vmatpush.msra.mxu0 0.0
    %592 = vmatpush.msra.mxu0 %v69
    %593 = vmatpush.msra.mxu0 %v68
    %594 = vmatpush.msra.mxu0 %v67
    %595 = vmatpush.msra.mxu0 %v66
    %596 = vmatmul.f32.gmra.mxu0 %v578
    %v597 = vpop.f32.mrf.mxu0
    %v598 = vadd.f32 0.0, %v597
    %599 = vdwg.mxu0
    %v601 = vrot.slane %v598, 4
    %v602 = vrot.slane %v598, 5
    %v605 = vadd.f32 %v106, %v601
    %v606 = vadd.f32 %v109, %v602
    %v607 = vxor.u32 %v605, 2147483648
    %v608 = vxor.u32 %v606, 2147483648
    %v609 = vmul.f32 %v607, 1.442695
    %v610 = vpow.pop %v609
    %v611 = vmul.f32 %v608, 1.442695
    %v612 = vpow.pop %v611
    %v613 = vadd.f32 %v610, 1.0
    %v614 = vadd.f32 %v612, 1.0
    %v615 = vrcp.pop %v613
    %v616 = vmul.f32 %v613, %v615
    %v617 = vsub.f32 1.0, %v616
    %v618 = vmul.f32 %v615, %v617
    %v619 = vadd.f32 %v615, %v618
    %vm620 = vweird.f32 %v613
    %vm621 = vweird.f32 %v615
    %vm622 = vmor %vm620, %vm621
    %v623 = vsel %vm622, %v615, %v619
    %v624 = vand.u32 2147483647, %v613
    %vm625 = vcmp.eq.f32.partialorder %v624, 8.507059e+37
    %v626 = vand.u32 %v613, 2147483648
    %v627 = vor.u32 1.1754944e-38, %v626
    %v628 = vsel %vm625, %v627, %v623
    %v629 = vmul.f32 1.0, %v628
    %v630 = vrcp.pop %v614
    %v631 = vmul.f32 %v614, %v630
    %v632 = vsub.f32 1.0, %v631
    %v633 = vmul.f32 %v630, %v632
    %v634 = vadd.f32 %v630, %v633
    %vm635 = vweird.f32 %v614
    %vm636 = vweird.f32 %v630
    %vm637 = vmor %vm635, %vm636
    %v638 = vsel %vm637, %v630, %v634
    %v639 = vand.u32 2147483647, %v614
    %vm640 = vcmp.eq.f32.partialorder %v639, 8.507059e+37
    %v641 = vand.u32 %v614, 2147483648
    %v642 = vor.u32 1.1754944e-38, %v641
    %v643 = vsel %vm640, %v642, %v638
    %v644 = vmul.f32 1.0, %v643
    %v645 = vtanh.pop %v605
    %v646 = vtanh.pop %v606
    %v649 = vrot.slane %v557, 7
    %v650 = vrot.slane %v558, 7
    %v653 = vmul.f32 %v629, %v649
    %v654 = vmul.f32 %v644, %v650
    %657 = vrot.lane.b32.xlu0 %v645, 64
    %v658 = vpop.permute.xlu0 %657
    %659 = vrot.lane.b32.xlu0 %v646, 64
    %v660 = vpop.permute.xlu0 %659
    %v663 = vmul.f32 %v629, %v658
    %v664 = vmul.f32 %v644, %v660
    %667 = vrot.lane.b32.xlu0 %v663, 32
    %v668 = vpop.permute.xlu0 %667
    %669 = vrot.lane.b32.xlu0 %v664, 32
    %v670 = vpop.permute.xlu0 %669
    %v673 = vadd.f32 %v653, %v668
    %v674 = vadd.f32 %v654, %v670
    %v675 = vtanh.pop %v673
    %v676 = vtanh.pop %v674
    %679 = vrot.lane.b32.xlu0 %v675, 64
    %v680 = vpop.permute.xlu0 %679
    %681 = vrot.lane.b32.xlu0 %v676, 64
    %v682 = vpop.permute.xlu0 %681
    %v685 = vmul.f32 %v629, %v680
    %v686 = vmul.f32 %v644, %v682
    %v689 = vrot.slane %v685, 4
    %v690 = vrot.slane %v686, 3
    %v691 = vsel %vm228, %v690, %v689
    %692 = vrot.lane.b32.xlu0 %v691, 32
    %v693 = vpop.permute.xlu0 %692
    %v694 = vsel %vm113, %v693, 0
    %696 = vmatpush.msra.mxu0 0.0
    %697 = vmatpush.msra.mxu0 0.0
    %698 = vmatpush.msra.mxu0 0.0
    %699 = vmatpush.msra.mxu0 0.0
    %700 = vmatpush.msra.mxu0 0.0
    %701 = vmatpush.msra.mxu0 0.0
    %702 = vmatpush.msra.mxu0 0.0
    %703 = vmatpush.msra.mxu0 0.0
    %704 = vmatpush.msra.mxu0 0.0
    %705 = vmatpush.msra.mxu0 0.0
    %706 = vmatpush.msra.mxu0 0.0
    %707 = vmatpush.msra.mxu0 0.0
    %708 = vmatpush.msra.mxu0 %v69
    %709 = vmatpush.msra.mxu0 %v68
    %710 = vmatpush.msra.mxu0 %v67
    %711 = vmatpush.msra.mxu0 %v66
    %712 = vmatmul.f32.gmra.mxu0 %v694
    %v713 = vpop.f32.mrf.mxu0
    %v714 = vadd.f32 0.0, %v713
    %715 = vdwg.mxu0
    %v717 = vrot.slane %v714, 3
    %v718 = vrot.slane %v714, 4
    %v721 = vadd.f32 %v106, %v717
    %v722 = vadd.f32 %v109, %v718
    %v723 = vxor.u32 %v721, 2147483648
    %v724 = vxor.u32 %v722, 2147483648
    %v725 = vmul.f32 %v723, 1.442695
    %v726 = vpow.pop %v725
    %v727 = vmul.f32 %v724, 1.442695
    %v728 = vpow.pop %v727
    %v729 = vadd.f32 %v726, 1.0
    %v730 = vadd.f32 %v728, 1.0
    %v731 = vrcp.pop %v729
    %v732 = vmul.f32 %v729, %v731
    %v733 = vsub.f32 1.0, %v732
    %v734 = vmul.f32 %v731, %v733
    %v735 = vadd.f32 %v731, %v734
    %vm736 = vweird.f32 %v729
    %vm737 = vweird.f32 %v731
    %vm738 = vmor %vm736, %vm737
    %v739 = vsel %vm738, %v731, %v735
    %v740 = vand.u32 2147483647, %v729
    %vm741 = vcmp.eq.f32.partialorder %v740, 8.507059e+37
    %v742 = vand.u32 %v729, 2147483648
    %v743 = vor.u32 1.1754944e-38, %v742
    %v744 = vsel %vm741, %v743, %v739
    %v745 = vmul.f32 1.0, %v744
    %v746 = vrcp.pop %v730
    %v747 = vmul.f32 %v730, %v746
    %v748 = vsub.f32 1.0, %v747
    %v749 = vmul.f32 %v746, %v748
    %v750 = vadd.f32 %v746, %v749
    %vm751 = vweird.f32 %v730
    %vm752 = vweird.f32 %v746
    %vm753 = vmor %vm751, %vm752
    %v754 = vsel %vm753, %v746, %v750
    %v755 = vand.u32 2147483647, %v730
    %vm756 = vcmp.eq.f32.partialorder %v755, 8.507059e+37
    %v757 = vand.u32 %v730, 2147483648
    %v758 = vor.u32 1.1754944e-38, %v757
    %v759 = vsel %vm756, %v758, %v754
    %v760 = vmul.f32 1.0, %v759
    %v761 = vtanh.pop %v721
    %v762 = vtanh.pop %v722
    %v765 = vrot.slane %v673, 7
    %v766 = vrot.slane %v674, 7
    %v769 = vmul.f32 %v745, %v765
    %v770 = vmul.f32 %v760, %v766
    %773 = vrot.lane.b32.xlu0 %v761, 64
    %v774 = vpop.permute.xlu0 %773
    %775 = vrot.lane.b32.xlu0 %v762, 64
    %v776 = vpop.permute.xlu0 %775
    %v779 = vmul.f32 %v745, %v774
    %v780 = vmul.f32 %v760, %v776
    %783 = vrot.lane.b32.xlu0 %v779, 32
    %v784 = vpop.permute.xlu0 %783
    %785 = vrot.lane.b32.xlu0 %v780, 32
    %v786 = vpop.permute.xlu0 %785
    %v789 = vadd.f32 %v769, %v784
    %v790 = vadd.f32 %v770, %v786
    %v791 = vtanh.pop %v789
    %v792 = vtanh.pop %v790
    %795 = vrot.lane.b32.xlu0 %v791, 64
    %v796 = vpop.permute.xlu0 %795
    %797 = vrot.lane.b32.xlu0 %v792, 64
    %v798 = vpop.permute.xlu0 %797
    %v801 = vmul.f32 %v745, %v796
    %v802 = vmul.f32 %v760, %v798
    %v805 = vrot.slane %v801, 5
    %v806 = vrot.slane %v802, 4
    %v807 = vsel %vm228, %v806, %v805
    %808 = vrot.lane.b32.xlu0 %v807, 32
    %v809 = vpop.permute.xlu0 %808
    %v810 = vsel %vm113, %v809, 0
    %812 = vmatpush.msra.mxu0 0.0
    %813 = vmatpush.msra.mxu0 0.0
    %814 = vmatpush.msra.mxu0 0.0
    %815 = vmatpush.msra.mxu0 0.0
    %816 = vmatpush.msra.mxu0 0.0
    %817 = vmatpush.msra.mxu0 0.0
    %818 = vmatpush.msra.mxu0 0.0
    %819 = vmatpush.msra.mxu0 0.0
    %820 = vmatpush.msra.mxu0 0.0
    %821 = vmatpush.msra.mxu0 0.0
    %822 = vmatpush.msra.mxu0 0.0
    %823 = vmatpush.msra.mxu0 0.0
    %824 = vmatpush.msra.mxu0 %v69
    %825 = vmatpush.msra.mxu0 %v68
    %826 = vmatpush.msra.mxu0 %v67
    %827 = vmatpush.msra.mxu0 %v66
    %828 = vmatmul.f32.gmra.mxu0 %v810
    %v829 = vpop.f32.mrf.mxu0
    %v830 = vadd.f32 0.0, %v829
    %831 = vdwg.mxu0
    %v833 = vrot.slane %v830, 2
    %v834 = vrot.slane %v830, 3
    %v837 = vadd.f32 %v106, %v833
    %v838 = vadd.f32 %v109, %v834
    %v839 = vxor.u32 %v837, 2147483648
    %v840 = vxor.u32 %v838, 2147483648
    %v841 = vmul.f32 %v839, 1.442695
    %v842 = vpow.pop %v841
    %v843 = vmul.f32 %v840, 1.442695
    %v844 = vpow.pop %v843
    %v845 = vadd.f32 %v842, 1.0
    %v846 = vadd.f32 %v844, 1.0
    %v847 = vrcp.pop %v845
    %v848 = vmul.f32 %v845, %v847
    %v849 = vsub.f32 1.0, %v848
    %v850 = vmul.f32 %v847, %v849
    %v851 = vadd.f32 %v847, %v850
    %vm852 = vweird.f32 %v845
    %vm853 = vweird.f32 %v847
    %vm854 = vmor %vm852, %vm853
    %v855 = vsel %vm854, %v847, %v851
    %v856 = vand.u32 2147483647, %v845
    %vm857 = vcmp.eq.f32.partialorder %v856, 8.507059e+37
    %v858 = vand.u32 %v845, 2147483648
    %v859 = vor.u32 1.1754944e-38, %v858
    %v860 = vsel %vm857, %v859, %v855
    %v861 = vmul.f32 1.0, %v860
    %v862 = vrcp.pop %v846
    %v863 = vmul.f32 %v846, %v862
    %v864 = vsub.f32 1.0, %v863
    %v865 = vmul.f32 %v862, %v864
    %v866 = vadd.f32 %v862, %v865
    %vm867 = vweird.f32 %v846
    %vm868 = vweird.f32 %v862
    %vm869 = vmor %vm867, %vm868
    %v870 = vsel %vm869, %v862, %v866
    %v871 = vand.u32 2147483647, %v846
    %vm872 = vcmp.eq.f32.partialorder %v871, 8.507059e+37
    %v873 = vand.u32 %v846, 2147483648
    %v874 = vor.u32 1.1754944e-38, %v873
    %v875 = vsel %vm872, %v874, %v870
    %v876 = vmul.f32 1.0, %v875
    %v877 = vtanh.pop %v837
    %v878 = vtanh.pop %v838
    %v881 = vrot.slane %v789, 7
    %v882 = vrot.slane %v790, 7
    %v885 = vmul.f32 %v861, %v881
    %v886 = vmul.f32 %v876, %v882
    %889 = vrot.lane.b32.xlu0 %v877, 64
    %v890 = vpop.permute.xlu0 %889
    %891 = vrot.lane.b32.xlu0 %v878, 64
    %v892 = vpop.permute.xlu0 %891
    %v895 = vmul.f32 %v861, %v890
    %v896 = vmul.f32 %v876, %v892
    %899 = vrot.lane.b32.xlu0 %v895, 32
    %v900 = vpop.permute.xlu0 %899
    %901 = vrot.lane.b32.xlu0 %v896, 32
    %v902 = vpop.permute.xlu0 %901
    %v905 = vadd.f32 %v885, %v900
    %v906 = vadd.f32 %v886, %v902
    %v907 = vtanh.pop %v905
    %v908 = vtanh.pop %v906
    %911 = vrot.lane.b32.xlu0 %v907, 64
    %v912 = vpop.permute.xlu0 %911
    %913 = vrot.lane.b32.xlu0 %v908, 64
    %v914 = vpop.permute.xlu0 %913
    %v917 = vmul.f32 %v861, %v912
    %v918 = vmul.f32 %v876, %v914
    %v921 = vrot.slane %v917, 6
    %v922 = vrot.slane %v918, 5
    %v923 = vsel %vm228, %v922, %v921
    %924 = vrot.lane.b32.xlu0 %v923, 32
    %v925 = vpop.permute.xlu0 %924
    %v926 = vsel %vm113, %v925, 0
    %928 = vmatpush.msra.mxu0 0.0
    %929 = vmatpush.msra.mxu0 0.0
    %930 = vmatpush.msra.mxu0 0.0
    %931 = vmatpush.msra.mxu0 0.0
    %932 = vmatpush.msra.mxu0 0.0
    %933 = vmatpush.msra.mxu0 0.0
    %934 = vmatpush.msra.mxu0 0.0
    %935 = vmatpush.msra.mxu0 0.0
    %936 = vmatpush.msra.mxu0 0.0
    %937 = vmatpush.msra.mxu0 0.0
    %938 = vmatpush.msra.mxu0 0.0
    %939 = vmatpush.msra.mxu0 0.0
    %940 = vmatpush.msra.mxu0 %v69
    %941 = vmatpush.msra.mxu0 %v68
    %942 = vmatpush.msra.mxu0 %v67
    %943 = vmatpush.msra.mxu0 %v66
    %944 = vmatmul.f32.gmra.mxu0 %v926
    %v945 = vpop.f32.mrf.mxu0
    %v946 = vadd.f32 0.0, %v945
    %947 = vdwg.mxu0
    %v949 = vrot.slane %v946, 1
    %v950 = vrot.slane %v946, 2
    %v953 = vadd.f32 %v106, %v949
    %v954 = vadd.f32 %v109, %v950
    %v955 = vxor.u32 %v953, 2147483648
    %v956 = vxor.u32 %v954, 2147483648
    %v957 = vmul.f32 %v955, 1.442695
    %v958 = vpow.pop %v957
    %v959 = vmul.f32 %v956, 1.442695
    %v960 = vpow.pop %v959
    %v961 = vadd.f32 %v958, 1.0
    %v962 = vadd.f32 %v960, 1.0
    %v963 = vrcp.pop %v961
    %v964 = vmul.f32 %v961, %v963
    %v965 = vsub.f32 1.0, %v964
    %v966 = vmul.f32 %v963, %v965
    %v967 = vadd.f32 %v963, %v966
    %vm968 = vweird.f32 %v961
    %vm969 = vweird.f32 %v963
    %vm970 = vmor %vm968, %vm969
    %v971 = vsel %vm970, %v963, %v967
    %v972 = vand.u32 2147483647, %v961
    %vm973 = vcmp.eq.f32.partialorder %v972, 8.507059e+37
    %v974 = vand.u32 %v961, 2147483648
    %v975 = vor.u32 1.1754944e-38, %v974
    %v976 = vsel %vm973, %v975, %v971
    %v977 = vmul.f32 1.0, %v976
    %v978 = vrcp.pop %v962
    %v979 = vmul.f32 %v962, %v978
    %v980 = vsub.f32 1.0, %v979
    %v981 = vmul.f32 %v978, %v980
    %v982 = vadd.f32 %v978, %v981
    %vm983 = vweird.f32 %v962
    %vm984 = vweird.f32 %v978
    %vm985 = vmor %vm983, %vm984
    %v986 = vsel %vm985, %v978, %v982
    %v987 = vand.u32 2147483647, %v962
    %vm988 = vcmp.eq.f32.partialorder %v987, 8.507059e+37
    %v989 = vand.u32 %v962, 2147483648
    %v990 = vor.u32 1.1754944e-38, %v989
    %v991 = vsel %vm988, %v990, %v986
    %v992 = vmul.f32 1.0, %v991
    %v993 = vtanh.pop %v953
    %v994 = vtanh.pop %v954
    %v997 = vrot.slane %v905, 7
    %v998 = vrot.slane %v906, 7
    %v1001 = vmul.f32 %v977, %v997
    %v1002 = vmul.f32 %v992, %v998
    %1005 = vrot.lane.b32.xlu0 %v993, 64
    %v1006 = vpop.permute.xlu0 %1005
    %1007 = vrot.lane.b32.xlu0 %v994, 64
    %v1008 = vpop.permute.xlu0 %1007
    %v1011 = vmul.f32 %v977, %v1006
    %v1012 = vmul.f32 %v992, %v1008
    %1015 = vrot.lane.b32.xlu0 %v1011, 32
    %v1016 = vpop.permute.xlu0 %1015
    %1017 = vrot.lane.b32.xlu0 %v1012, 32
    %v1018 = vpop.permute.xlu0 %1017
    %v1021 = vadd.f32 %v1001, %v1016
    %v1022 = vadd.f32 %v1002, %v1018
    %v1023 = vtanh.pop %v1021
    %v1024 = vtanh.pop %v1022
    %1027 = vrot.lane.b32.xlu0 %v1023, 64
    %v1028 = vpop.permute.xlu0 %1027
    %1029 = vrot.lane.b32.xlu0 %v1024, 64
    %v1030 = vpop.permute.xlu0 %1029
    %v1033 = vmul.f32 %v977, %v1028
    %v1034 = vmul.f32 %v992, %v1030
    %v1037 = vrot.slane %v1034, 7
    %1038 = vrot.lane.b32.xlu0 %v1033, 32
    %v1039 = vpop.permute.xlu0 %1038
    %1040 = vrot.lane.b32.xlu0 %v1037, 32
    %v1041 = vpop.permute.xlu0 %1040
    %vm1044 = vcmask 261127
    %1045 = vst.msk [vmem:[#allocation8 - $0x7] sm:$0x80] %vm1044, %v1039
    %vm1046 = vcmask 253952
    %1047 = vst.msk [vmem:[#allocation8 + $0x1] sm:$0x1] %vm1046, %v1041
    %v1050 = vrot.slane %v1022, 7
    %1051 = vrot.lane.b32.xlu0 %v1021, 96
    %v1052 = vpop.permute.xlu0 %1051
    %1053 = vrot.lane.b32.xlu0 %v1050, 96
    %v1054 = vpop.permute.xlu0 %1053
    %1057 = vst.msk [vmem:[#allocation10 - $0x7] sm:$0x80] %vm1044, %v1052
    %1058 = vst.msk [vmem:[#allocation10 + $0x1] sm:$0x1] %vm1046, %v1054
    %vm1059 = vcmask 1040384
    %v1060 = vsel %vm1059, %v223, %v338
    %v1061 = vsel %vm1059, %v224, %v339
    %vm1062 = vcmask 1041408
    %v1063 = vsel %vm1062, %v1060, %v453
    %v1064 = vsel %vm1062, %v1061, %v454
    %vm1065 = vcmask 1042432
    %v1066 = vsel %vm1065, %v1063, %v569
    %v1067 = vsel %vm1065, %v1064, %v570
    %v1068 = vsel %vm84, %v1066, %v685
    %v1069 = vsel %vm84, %v1067, %v686
    %vm1070 = vcmask 1044480
    %v1071 = vsel %vm1070, %v1068, %v801
    %v1072 = vsel %vm1070, %v1069, %v802
    %vm1073 = vcmask 1045504
    %v1074 = vsel %vm1073, %v1071, %v917
    %v1075 = vsel %vm1073, %v1072, %v918
    %vm1076 = vcmask 1046528
    %v1077 = vsel %vm1076, %v1074, %v1033
    %v1078 = vsel %vm1076, %v1075, %v1034
    %v1079 = vld [vmem:[#allocation5] sm:$0xff]
    %v1080 = vld [vmem:[#allocation5 + $0x8] sm:$0xff]
    %v1081 = vld [vmem:[#allocation5 + $0x10] sm:$0xff]
    %v1082 = vld [vmem:[#allocation5 + $0x18] sm:$0xff]
    %v1083 = vld [vmem:[%s7] sm:$0x1]
    %v1085 = vperm.slane %v1083, 0
    %1089 = vrot.lane.b32.xlu0 %v1077, 32
    %v1090 = vpop.permute.xlu0 %1089
    %1091 = vrot.lane.b32.xlu0 %v1078, 32
    %v1092 = vpop.permute.xlu0 %1091
    %v1093 = vsel %vm113, %v1090, 0
    %v1095 = vsel %vm113, %v1092, 0
    %1097 = vmatpush.msra.mxu0 0.0
    %1098 = vmatpush.msra.mxu0 0.0
    %1099 = vmatpush.msra.mxu0 0.0
    %1100 = vmatpush.msra.mxu0 0.0
    %1101 = vmatpush.msra.mxu0 0.0
    %1102 = vmatpush.msra.mxu0 0.0
    %1103 = vmatpush.msra.mxu0 0.0
    %1104 = vmatpush.msra.mxu0 0.0
    %1105 = vmatpush.msra.mxu0 0.0
    %1106 = vmatpush.msra.mxu0 0.0
    %1107 = vmatpush.msra.mxu0 0.0
    %1108 = vmatpush.msra.mxu0 0.0
    %1109 = vmatpush.msra.mxu0 %v1082
    %1110 = vmatpush.msra.mxu0 %v1081
    %1111 = vmatpush.msra.mxu0 %v1080
    %1112 = vmatpush.msra.mxu0 %v1079
    %1113 = vmatmul.f32.gmra.mxu0 %v1093
    %v1114 = vpop.f32.mrf.mxu0
    %v1115 = vadd.f32 %v1085, %v1114
    %1116 = vmatmul.f32.gmra.mxu0 %v1095
    %v1117 = vpop.f32.mrf.mxu0
    %v1118 = vadd.f32 %v1085, %v1117
    %1119 = vdwg.mxu0
    %1120 = vst [vmem:[#allocation7] sm:$0xff] %v1115
    %1121 = vst [vmem:[#allocation7 + $0x8] sm:$0xff] %v1118
    // Predicated region
    $region42: #{tpu_custom_call.1} parent=1 // pred_check
      _
    $region43: #{tpu_custom_call.1} parent=1 // pred_check_branch
      %1123 = sbr.rel (0) target = $region45
    $region44: #{tpu_custom_call.1} parent=1 // pred_region
      %1125 = vsyncadd [#allocation4], 0
      %s1126 = sshll.u32 [#allocation7], 4
      %s1127 = int_to_ptr.vmem [resolvable:$true] %s1126
      %s1128 = sshll.u32 %s8, 4
      %s1129 = int_to_ptr.hbm [resolvable:$true] %s1128
      %1134 = dma.vmem_to_hbm [thread:$0]  %s1127, 256, %s1129, [#allocation4], 128, 128, 8
    $region45: #{tpu_custom_call.1} parent=1 // pred_fallthru
      _
    // Predicated region
    $region46: #{tpu_custom_call.1} parent=1 // pred_check
      _
    $region47: #{tpu_custom_call.1} parent=1 // pred_check_branch
      %1136 = sbr.rel (0) target = $region49
    $region48: #{tpu_custom_call.1} parent=1 // pred_region
      %1138 = vsyncadd [#allocation9], 0
      %s1140 = sshll.u32 [#allocation8], 4
      %s1141 = int_to_ptr.vmem [resolvable:$true] %s1140
      %s1142 = sshll.u32 %s9, 4
      %s1143 = int_to_ptr.hbm [resolvable:$true] %s1142
      %1145 = dma.vmem_to_hbm [thread:$0]  %s1141, 32, %s1143, [#allocation9]
    $region49: #{tpu_custom_call.1} parent=1 // pred_fallthru
      _
    // Predicated region
    $region50: #{tpu_custom_call.1} parent=1 // pred_check
      _
    $region51: #{tpu_custom_call.1} parent=1 // pred_check_branch
      %1147 = sbr.rel (0) target = $region53
    $region52: #{tpu_custom_call.1} parent=1 // pred_region
      %1149 = vsyncadd [#allocation9], 0
      %s1151 = sshll.u32 [#allocation10], 4
      %s1152 = int_to_ptr.vmem [resolvable:$true] %s1151
      %s1153 = sshll.u32 %s10, 4
      %s1154 = int_to_ptr.hbm [resolvable:$true] %s1153
      %1156 = dma.vmem_to_hbm [thread:$0]  %s1152, 32, %s1154, [#allocation9]
    $region53: #{tpu_custom_call.1} parent=1 // pred_fallthru
      _
    // Predicated region
    $region54: #{tpu_custom_call.1} parent=1 // pred_check
      _
    $region55: #{tpu_custom_call.1} parent=1 // pred_check_branch
      %1158 = sbr.rel (0) target = $region57
    $region56: #{tpu_custom_call.1} parent=1 // pred_region
      %1160 = dma.done [#allocation4], 256
    $region57: #{tpu_custom_call.1} parent=1 // pred_fallthru
      _
    // Predicated region
    $region58: #{tpu_custom_call.1} parent=1 // pred_check
      _
    $region59: #{tpu_custom_call.1} parent=1 // pred_check_branch
      %1162 = sbr.rel (0) target = $region61
    $region60: #{tpu_custom_call.1} parent=1 // pred_region
      %1164 = dma.done [#allocation9], 32
    $region61: #{tpu_custom_call.1} parent=1 // pred_fallthru
      _
    // Predicated region
    $region62: #{tpu_custom_call.1} parent=1 // pred_check
      _
    $region63: #{tpu_custom_call.1} parent=1 // pred_check_branch
      %1166 = sbr.rel (0) target = $region65
    $region64: #{tpu_custom_call.1} parent=1 // pred_region
      %1168 = dma.done [#allocation9], 32
    $region65: #{tpu_custom_call.1} parent=1 // pred_fallthru
      _
    %1169 = vsyncpa [#allocation3], 1
    %1170 = vsyncpa [#allocation6], 1
    %1171 = vsyncpa [#allocation4], 1
    %1172 = vsyncpa [#allocation9], 1

</llo_original>
